<compile_context>
chip_gen: v6e
topology: v6e:2x2x1
jax: 0.10.0
libtpu: 0.0.40
codegen_flags: <defaults>
</compile_context>

<pallas_src>
import jax
import jax.numpy as jnp
from jax.experimental import pallas as pl
from jax.experimental.pallas import tpu as pltpu


def _identity_kernel(x_ref, o_ref):
    # Whole tile resident in VMEM -> straight copy (loads + full-width stores).
    o_ref[...] = x_ref[...]


# Lane-dense column widths to try (largest first), all multiples of 128.
_LANE_WIDTHS = (4096, 2048, 1024, 512, 256, 128)
# Per-tile VMEM budget (bytes).  4 buffers (double-buffered in+out) -> 8 MiB
# resident, which fits every generation's scoped VMEM default.
_TILE_BYTES = 2 * 1024 * 1024


def _identity_copy_lane_dense(x):
    """Materialized identity copy of `x` via a lane-dense tiled Pallas kernel.

    Returns None if a lane-dense reshape is not possible (total elements not a
    multiple of 128); caller falls back to returning x unchanged.
    """
    total = 1
    for d in x.shape:
        total *= d
    if total == 0:
        return None

    cols = None
    for w in _LANE_WIDTHS:
        if total % w == 0:
            cols = w
            break
    if cols is None:
        return None

    rows = total // cols
    itemsize = jnp.dtype(x.dtype).itemsize
    # Sublane packing: 8 rows for 32-bit, 16 for 16-bit, 32 for 8-bit dtypes.
    sub = 8 * max(1, 4 // itemsize)

    if rows <= sub:
        # Tiny input: single full-extent block (legal since it equals the
        # full array dims); kernel overhead is negligible at this size.
        tile_rows = rows
    else:
        cap = max(sub, (_TILE_BYTES // (cols * itemsize)) // sub * sub)
        tile_rows = min(cap, (rows // sub) * sub)
        tile_rows = max(tile_rows, sub)

    x2d = x.reshape(rows, cols)
    grid = (pl.cdiv(rows, tile_rows),)

    y2d = pl.pallas_call(
        _identity_kernel,
        out_shape=jax.ShapeDtypeStruct((rows, cols), x.dtype),
        grid_spec=pltpu.PrefetchScalarGridSpec(
            num_scalar_prefetch=0,
            grid=grid,
            in_specs=[pl.BlockSpec((tile_rows, cols), lambda i: (i, 0))],
            out_specs=pl.BlockSpec((tile_rows, cols), lambda i: (i, 0)),
        ),
        compiler_params=pltpu.CompilerParams(
            dimension_semantics=("parallel",),
        ),
    )(x2d)
    return y2d.reshape(x.shape)


class DimensionCheckLayer:
    """JAX/Pallas equivalent of the PyTorch DimensionCheckLayer."""

    def __init__(self, name, expected_dims):
        self.name = name
        self.expected_dims = expected_dims

    def __call__(self, x, materialize=False):
        # Static, trace-time dimension check (same semantics as PyTorch: it
        # only inspects len(x.shape)).  Note: under jit this prints once per
        # compilation, not once per call.
        if len(x.shape) != self.expected_dims:
            print(
                f"WARNING: {self.name} has {len(x.shape)} dimensions, "
                f"expected {self.expected_dims}"
            )

        if not materialize:
            # Hot path: the layer is a pure identity -> zero-copy return.
            return x

        if x.ndim == 0:
            # TODO(synk): 0-d identity has no meaningful Pallas tiling.
            return x

        y = _identity_copy_lane_dense(x)
        if y is None:
            # TODO(synk): element count not a multiple of 128 -- a lane-dense
            # Pallas copy would need padding; identity semantics make the
            # zero-copy return exact anyway.
            return x
        return y


if __name__ == "__main__":
    key = jax.random.PRNGKey(0)
    # Small NCHW input consistent with a conv-stack where this debug layer
    # would sit: batch=2, channels=4, spatial=16x16.
    x = jax.random.normal(key, (2, 4, 16, 16), dtype=jnp.float32)

    layer = DimensionCheckLayer("conv_block_out", expected_dims=4)

    # Default (optimized) path: pure identity, no kernel.
    y_fast = jax.block_until_ready(layer(x))
    assert y_fast.shape == x.shape and y_fast.dtype == x.dtype
    assert bool(jnp.all(y_fast == x))

    # Debug path: run the Pallas lane-dense identity copy once.
    y_mat = jax.block_until_ready(layer(x, materialize=True))
    assert y_mat.shape == x.shape and y_mat.dtype == x.dtype
    assert bool(jnp.all(y_mat == x))

    # Exercise the warning path (wrong ndim) -- still returns x unchanged.
    x3 = jax.random.normal(jax.random.PRNGKey(1), (2, 8, 32), dtype=jnp.float32)
    y3 = jax.block_until_ready(layer(x3))
    assert bool(jnp.all(y3 == x3))

    print("KERNEL_OK")
</pallas_src>

<mosaic_0001>
module attributes {stable_mosaic.version = 11 : i64} {
  func.func @_identity_kernel(%arg0: i32, %arg1: memref<1x2048xf32, #tpu.memory_space<vmem>>, %arg2: memref<1x2048xf32, #tpu.memory_space<vmem>>) attributes {dimension_semantics = [#tpu.dimension_semantics<parallel>], iteration_bounds = array<i64: 1>, scalar_prefetch = 0 : i64, scratch_operands = 0 : i64, tpu.core_type = #tpu.core_type<tc>, window_params = [{transform_indices = @transform_0, window_bounds = array<i64: 1, 2048>}, {transform_indices = @transform_1, window_bounds = array<i64: 1, 2048>}]} {
    %c0 = arith.constant 0 : index
    %c0_0 = arith.constant 0 : index
    %0 = vector.load %arg1[%c0, %c0_0] : memref<1x2048xf32, #tpu.memory_space<vmem>>, vector<1x2048xf32>
    %c0_1 = arith.constant 0 : index
    %c0_2 = arith.constant 0 : index
    %1 = vector.load %arg2[%c0_1, %c0_2] : memref<1x2048xf32, #tpu.memory_space<vmem>>, vector<1x2048xf32>
    tpu.vector_store %arg2[%c0_1, %c0_2], %0 {strides = array<i32>} : memref<1x2048xf32, #tpu.memory_space<vmem>>, vector<1x2048xf32>,
    return
  }
  func.func @transform_0(%arg0: i32) -> (i32, i32) {
    %c0_i32 = arith.constant 0 : i32
    %c0_i32_0 = arith.constant 0 : i32
    return %arg0, %c0_i32 : i32, i32
  }
  func.func @transform_1(%arg0: i32) -> (i32, i32) {
    %c0_i32 = arith.constant 0 : i32
    %c0_i32_0 = arith.constant 0 : i32
    return %arg0, %c0_i32 : i32, i32
  }
}

</mosaic_0001>

<llo_original>
// kernel: tpu_custom_call.1
$region0: #{tpu_custom_call.1}
  #allocation0 [shape = 'u32[]', space=smem, size = 0x4, offset = 0x4, fixed_abs, tag = 'smem constant byte address 0x4 - core index']
  #allocation1 [shape = 'u32[144,128]{1,0:T(1,128)}', space=vmem, size = 0x12000, scoped, tag = 'internal scratch']
  %s0 = inlined_call_operand.hbm [shape: f32[1,2048], index: 0, kind: input, shape index: {}]
  %s1 = inlined_call_operand.hbm [shape: f32[1,2048], index: 1, kind: output, shape index: {}]
  %s2 = sld [smem:[#allocation0]]
  $region18: #{tpu_custom_call.1} parent=0
    _
  %s4 = ssub.s32 1, %s2
  %s5 = scalar_select 0, %s4, %s2
  $region1: #{tpu_custom_call.1} parent=0
    #allocation2 [shape = 'u8[8192]{0}', space=vmem, size = 0x2000, scoped, tag = 'input window, operand 0, single buffered']
    #allocation3 [shape = 's32[1]{0}', space=sflag, size = 0x4, scoped, tag = 'scoped memory for tpu_custom_call.1']
    #allocation4 [shape = 's32[1]{0}', space=sflag, size = 0x4, scoped, tag = 'scoped memory for tpu_custom_call.1']
    #allocation5 [shape = 'u8[8192]{0}', space=vmem, size = 0x2000, scoped, tag = 'output window, operand 0, single buffered']
    %6 = vsyncpa [#allocation3], 0
    %7 = vsyncpa [#allocation4], 0
    // Predicated region
    $region2: #{tpu_custom_call.1} parent=1 // pred_check
      _
    $region3: #{tpu_custom_call.1} parent=1 // pred_check_branch
      %9 = sbr.rel (0) target = $region5
    $region4: #{tpu_custom_call.1} parent=1 // pred_region
      %s11 = ssub.s32 256, 256
      %12 = vsyncadd [#allocation3], %s11
      %s14 = sshll.u32 [#allocation2], 4
      %s15 = int_to_ptr.vmem [resolvable:$true] %s14
      %17 = dma.hbm_to_vmem [thread:$0]  %s0, 256, %s15, [#allocation3]
    $region5: #{tpu_custom_call.1} parent=1 // pred_fallthru
      _
    // Predicated region
    $region6: #{tpu_custom_call.1} parent=1 // pred_check
      _
    $region7: #{tpu_custom_call.1} parent=1 // pred_check_branch
      %19 = sbr.rel (0) target = $region9
    $region8: #{tpu_custom_call.1} parent=1 // pred_region
      %20 = dma.done [#allocation3], 256
    $region9: #{tpu_custom_call.1} parent=1 // pred_fallthru
      _
    %v21 = vld [vmem:[#allocation2] sm:$0xff]
    %v22 = vld [vmem:[#allocation2 + $0x8] sm:$0xff]
    %23 = vst [vmem:[#allocation5] sm:$0xff] %v21
    %24 = vst [vmem:[#allocation5 + $0x8] sm:$0xff] %v22
    // Predicated region
    $region10: #{tpu_custom_call.1} parent=1 // pred_check
      _
    $region11: #{tpu_custom_call.1} parent=1 // pred_check_branch
      %26 = sbr.rel (0) target = $region13
    $region12: #{tpu_custom_call.1} parent=1 // pred_region
      %s28 = ssub.s32 256, 256
      %29 = vsyncadd [#allocation4], %s28
      %s31 = sshll.u32 [#allocation5], 4
      %s32 = int_to_ptr.vmem [resolvable:$true] %s31
      %34 = dma.vmem_to_hbm [thread:$0]  %s32, 256, %s1, [#allocation4]
    $region13: #{tpu_custom_call.1} parent=1 // pred_fallthru
      _
    // Predicated region
    $region14: #{tpu_custom_call.1} parent=1 // pred_check
      _
    $region15: #{tpu_custom_call.1} parent=1 // pred_check_branch
      %36 = sbr.rel (0) target = $region17
    $region16: #{tpu_custom_call.1} parent=1 // pred_region
      %37 = dma.done [#allocation4], 256
    $region17: #{tpu_custom_call.1} parent=1 // pred_fallthru
      _
    %38 = vsyncpa [#allocation3], 1
    %39 = vsyncpa [#allocation4], 1

</llo_original>
